<compile_context>
chip_gen: v7x
topology: tpu7x:2x2x1
jax: 0.10.0
libtpu: 0.0.40
codegen_flags: <defaults>
</compile_context>

<pallas_src>
import functools

import jax
import jax.numpy as jnp
from jax.experimental import pallas as pl
from jax.experimental.pallas import tpu as pltpu


_WEIGHT_RESIDENT_BYTES = 8 * 1024 * 1024   # whole-weight residency budget
_VMEM_BUDGET_BYTES = 40 * 1024 * 1024      # working-set cap (double-buffered)
_VMEM_LIMIT_BYTES = 48 * 1024 * 1024       # scoped VMEM limit passed to Mosaic


def _round_up(x: int, m: int) -> int:
    return ((x + m - 1) // m) * m


def _sublane_pack(dtype) -> int:
    """Rows per packed sublane group: 8 for f32, 16 for bf16, 32 for int8/fp8."""
    return max(8, 32 // jnp.dtype(dtype).itemsize)


def _working_set_bytes(tm, tk, tn, x_bytes, w_bytes, o_bytes, with_acc):
    """Double-buffered VMEM working set estimate for one grid step."""
    ws = 2 * (tm * tk * x_bytes + tk * tn * w_bytes + tn * w_bytes
              + tm * tn * o_bytes)
    if with_acc:
        ws += tm * tn * 4
    return ws


def _linear_kernel_single_k(x_ref, w_ref, b_ref, o_ref):
    """One (tm, tn) output tile, whole K in one block: no accumulator."""
    acc = jnp.dot(x_ref[...], w_ref[...], preferred_element_type=jnp.float32)
    o_ref[...] = (acc + b_ref[...].astype(jnp.float32)).astype(o_ref.dtype)


def _linear_kernel_multi_k(x_ref, w_ref, b_ref, o_ref, acc_ref):
    """One (tm, tn) output tile; K reduction along grid axis 2 (innermost)."""
    k = pl.program_id(2)

    @pl.when(k == 0)
    def _():
        acc_ref[...] = jnp.zeros_like(acc_ref)

    acc_ref[...] += jnp.dot(
        x_ref[...], w_ref[...], preferred_element_type=jnp.float32
    )

    # Epilogue once, after the last K step: f32 bias add, then downcast.
    @pl.when(k == pl.num_programs(2) - 1)
    def _():
        o_ref[...] = (acc_ref[...] + b_ref[...].astype(jnp.float32)).astype(
            o_ref.dtype
        )


@functools.partial(jax.jit, static_argnames=("out_dtype",))
def simple_linear_model(x, w_t, b, *, out_dtype=None):
    """y = x @ w_t + b.

    x:   (batch, input_dim)
    w_t: (input_dim, output_dim)   (= PyTorch weight transposed)
    b:   (output_dim,)
    """
    M, K = x.shape
    K2, N = w_t.shape
    assert K == K2, (K, K2)
    out_dtype = out_dtype or x.dtype

    x_bytes = jnp.dtype(x.dtype).itemsize
    w_bytes = jnp.dtype(w_t.dtype).itemsize
    o_bytes = jnp.dtype(out_dtype).itemsize

    pack_m = _sublane_pack(x.dtype)
    K128 = _round_up(K, 128)
    N128 = _round_up(N, 128)

    # MXU-aligned tiles (256 on M, 512 on N on v6e/v7x; v5e's 128x128 MXU is
    # also satisfied since 256/512 are multiples of 128).
    tm = min(256, _round_up(M, pack_m))

    weight_resident = (
        K128 * N128 * w_bytes <= _WEIGHT_RESIDENT_BYTES
        and _working_set_bytes(tm, K128, N128, x_bytes, w_bytes, o_bytes,
                               with_acc=False) <= _VMEM_BUDGET_BYTES
    )
    if weight_resident:
        # Whole weight lives in VMEM (its block index is constant across the
        # grid, so it is DMA'd once); only x / out stream from HBM.
        tk, tn = K128, N128
    else:
        tn = min(512, N128)
        tk = min(1024, K128)

    Mp = _round_up(M, tm)
    Kp = _round_up(K, tk)
    Np = _round_up(N, tn)

    # Zero padding is exact for a matmul. No-op when already aligned.
    # TODO(synk): in a real deployment, pre-pad the weight/bias once at
    # parameter-load time instead of per call.
    x_p = x if (Mp, Kp) == (M, K) else jnp.pad(x, ((0, Mp - M), (0, Kp - K)))
    w_p = w_t if (Kp, Np) == (K, N) else jnp.pad(w_t, ((0, Kp - K), (0, Np - N)))
    b_p = b if Np == N else jnp.pad(b, (0, Np - N))
    b_p = b_p.reshape(1, Np)

    gm, gn, gk = Mp // tm, Np // tn, Kp // tk

    if gk == 1:
        # Single-K fast path: no scratch accumulator, 2-D grid.
        out = pl.pallas_call(
            _linear_kernel_single_k,
            out_shape=jax.ShapeDtypeStruct((Mp, Np), out_dtype),
            grid_spec=pltpu.PrefetchScalarGridSpec(
                num_scalar_prefetch=0,
                grid=(gm, gn),
                in_specs=[
                    pl.BlockSpec((tm, tk), lambda i, j: (i, 0)),
                    # Constant along i -> weight block stays resident in VMEM.
                    pl.BlockSpec((tk, tn), lambda i, j: (0, j)),
                    pl.BlockSpec((1, tn), lambda i, j: (0, j)),
                ],
                out_specs=pl.BlockSpec((tm, tn), lambda i, j: (i, j)),
            ),
            compiler_params=pltpu.CompilerParams(
                dimension_semantics=("parallel", "parallel"),
                vmem_limit_bytes=_VMEM_LIMIT_BYTES,
            ),
        )(x_p, w_p, b_p)
    else:
        out = pl.pallas_call(
            _linear_kernel_multi_k,
            out_shape=jax.ShapeDtypeStruct((Mp, Np), out_dtype),
            grid_spec=pltpu.PrefetchScalarGridSpec(
                num_scalar_prefetch=0,
                grid=(gm, gn, gk),   # K reduction is the innermost axis.
                in_specs=[
                    pl.BlockSpec((tm, tk), lambda i, j, k: (i, k)),
                    pl.BlockSpec((tk, tn), lambda i, j, k: (k, j)),
                    # Bias: constant along i and k -> resident, no re-DMA.
                    pl.BlockSpec((1, tn), lambda i, j, k: (0, j)),
                ],
                out_specs=pl.BlockSpec((tm, tn), lambda i, j, k: (i, j)),
                scratch_shapes=[pltpu.VMEM((tm, tn), jnp.float32)],
            ),
            compiler_params=pltpu.CompilerParams(
                dimension_semantics=("parallel", "parallel", "arbitrary"),
                vmem_limit_bytes=_VMEM_LIMIT_BYTES,
            ),
        )(x_p, w_p, b_p)

    if (Mp, Np) != (M, N):
        out = out[:M, :N]
    return out


if __name__ == "__main__":
    key = jax.random.PRNGKey(0)

    # --- Case 1: small shapes matching the module (batch=8, in=32, out=16).
    #     Exercises the weight-resident single-K fast path.
    batch, input_dim, output_dim = 8, 32, 16
    kx, kw, kb, key = jax.random.split(key, 4)

    bound = 1.0 / jnp.sqrt(jnp.float32(input_dim))
    weight = jax.random.uniform(
        kw, (output_dim, input_dim), jnp.float32, -bound, bound
    )
    bias = jax.random.uniform(kb, (output_dim,), jnp.float32, -bound, bound)
    x = jax.random.normal(kx, (batch, input_dim), jnp.float32)

    y = simple_linear_model(x, weight.T, bias)
    y = jax.block_until_ready(y)
    y_ref = x @ weight.T + bias
    assert y.shape == (batch, output_dim)
    assert jnp.allclose(y, y_ref, atol=1e-2, rtol=1e-2)

    # --- Case 2: large enough to exercise the streaming multi-K accumulator
    #     path (weight > residency budget, K padded and split into 2 steps).
    M2, K2, N2 = 256, 1536, 2048
    kx2, kw2, kb2, key = jax.random.split(key, 4)
    bound2 = 1.0 / jnp.sqrt(jnp.float32(K2))
    weight2 = jax.random.uniform(kw2, (N2, K2), jnp.float32, -bound2, bound2)
    bias2 = jax.random.uniform(kb2, (N2,), jnp.float32, -bound2, bound2)
    x2 = jax.random.normal(kx2, (M2, K2), jnp.float32)

    y2 = simple_linear_model(x2, weight2.T, bias2)
    y2 = jax.block_until_ready(y2)
    y2_ref = x2 @ weight2.T + bias2
    assert y2.shape == (M2, N2)
    assert jnp.allclose(y2, y2_ref, atol=2e-2, rtol=2e-2)

    # --- Case 3: ragged, unaligned dims -> exercises padding + output slice.
    M3, K3, N3 = 50, 300, 200
    kx3, kw3, kb3, _ = jax.random.split(key, 4)
    bound3 = 1.0 / jnp.sqrt(jnp.float32(K3))
    weight3 = jax.random.uniform(kw3, (N3, K3), jnp.float32, -bound3, bound3)
    bias3 = jax.random.uniform(kb3, (N3,), jnp.float32, -bound3, bound3)
    x3 = jax.random.normal(kx3, (M3, K3), jnp.float32)

    y3 = simple_linear_model(x3, weight3.T, bias3)
    y3 = jax.block_until_ready(y3)
    y3_ref = x3 @ weight3.T + bias3
    assert y3.shape == (M3, N3)
    assert jnp.allclose(y3, y3_ref, atol=2e-2, rtol=2e-2)

    print("KERNEL_OK")
</pallas_src>

<mosaic_0001>
module attributes {stable_mosaic.version = 11 : i64} {
  func.func @_linear_kernel_single_k(%arg0: i32, %arg1: i32, %arg2: memref<8x128xf32, #tpu.memory_space<vmem>>, %arg3: memref<128x128xf32, #tpu.memory_space<vmem>>, %arg4: memref<1x128xf32, #tpu.memory_space<vmem>>, %arg5: memref<8x128xf32, #tpu.memory_space<vmem>>) attributes {dimension_semantics = [#tpu.dimension_semantics<parallel>, #tpu.dimension_semantics<parallel>], iteration_bounds = array<i64: 1, 1>, scalar_prefetch = 0 : i64, scratch_operands = 0 : i64, tpu.core_type = #tpu.core_type<tc>, window_params = [{transform_indices = @transform_0, window_bounds = array<i64: 8, 128>}, {transform_indices = @transform_1, window_bounds = array<i64: 128, 128>}, {transform_indices = @transform_2, window_bounds = array<i64: 1, 128>}, {transform_indices = @transform_3, window_bounds = array<i64: 8, 128>}]} {
    %c0 = arith.constant 0 : index
    %c0_0 = arith.constant 0 : index
    %0 = vector.load %arg2[%c0, %c0_0] : memref<8x128xf32, #tpu.memory_space<vmem>>, vector<8x128xf32>
    %c0_1 = arith.constant 0 : index
    %c0_2 = arith.constant 0 : index
    %1 = vector.load %arg3[%c0_1, %c0_2] : memref<128x128xf32, #tpu.memory_space<vmem>>, vector<128x128xf32>
    %cst = arith.constant dense<0.000000e+00> : vector<8x128xf32>
    %2 = tpu.matmul %0, %1, %cst {dimension_numbers = #tpu.dot_dimension_numbers<[1], [0], [0], [1], [0, 0, 1, 1], [], []>} : vector<8x128xf32>, vector<128x128xf32>, vector<8x128xf32> -> vector<8x128xf32>
    %c0_3 = arith.constant 0 : index
    %c0_4 = arith.constant 0 : index
    %3 = vector.load %arg4[%c0_3, %c0_4] : memref<1x128xf32, #tpu.memory_space<vmem>>, vector<1x128xf32>
    %4 = vector.broadcast %3 : vector<1x128xf32> to vector<8x128xf32>
    %5 = arith.addf %2, %4 : vector<8x128xf32>
    %c0_5 = arith.constant 0 : index
    %c0_6 = arith.constant 0 : index
    %6 = vector.load %arg5[%c0_5, %c0_6] : memref<8x128xf32, #tpu.memory_space<vmem>>, vector<8x128xf32>
    tpu.vector_store %arg5[%c0_5, %c0_6], %5 {strides = array<i32>} : memref<8x128xf32, #tpu.memory_space<vmem>>, vector<8x128xf32>,
    return
  }
  func.func @transform_0(%arg0: i32, %arg1: i32) -> (i32, i32) {
    %c0_i32 = arith.constant 0 : i32
    %c0_i32_0 = arith.constant 0 : i32
    return %arg0, %c0_i32 : i32, i32
  }
  func.func @transform_1(%arg0: i32, %arg1: i32) -> (i32, i32) {
    %c0_i32 = arith.constant 0 : i32
    %c0_i32_0 = arith.constant 0 : i32
    return %c0_i32, %arg1 : i32, i32
  }
  func.func @transform_2(%arg0: i32, %arg1: i32) -> (i32, i32) {
    %c0_i32 = arith.constant 0 : i32
    %c0_i32_0 = arith.constant 0 : i32
    return %c0_i32, %arg1 : i32, i32
  }
  func.func @transform_3(%arg0: i32, %arg1: i32) -> (i32, i32) {
    %c0_i32 = arith.constant 0 : i32
    return %arg0, %arg1 : i32, i32
  }
}

</mosaic_0001>

<llo_original>
// kernel: simple_linear_model.1
$region0: #{simple_linear_model.1}
  #allocation0 [shape = 'u32[]', space=smem, size = 0x4, offset = 0x4, fixed_abs, tag = 'smem constant byte address 0x4 - core index']
  #allocation1 [shape = 'u32[144,128]{1,0:T(1,128)}', space=vmem, size = 0x12000, scoped, tag = 'internal scratch']
  %s0 = inlined_call_operand.vmem [shape: f32[8,128], index: 0, kind: input, shape index: {}]
  %s1 = inlined_call_operand.vmem [shape: f32[128,128], index: 1, kind: input, shape index: {}]
  %s2 = inlined_call_operand.vmem [shape: f32[1,128], index: 2, kind: input, shape index: {}]
  %s3 = inlined_call_operand.hbm [shape: f32[8,128], index: 3, kind: output, shape index: {}]
  %s4 = sld [smem:[#allocation0]]
  $region22: #{simple_linear_model.1} parent=0
    _
  %s6 = ssub.s32 1, %s4
  %s7 = scalar_select 0, %s6, %s4
  $region1: #{simple_linear_model.1} parent=0
    #allocation2 [shape = 'u8[4096]{0}', space=vmem, size = 0x1000, scoped, tag = 'output window, operand 0, single buffered']
    #allocation3 [shape = 's32[1]{0}', space=sflag, size = 0x4, scoped, tag = 'scoped memory for simple_linear_model.1']
    %8 = vsyncpa [#allocation3], 0
    // Predicated region
    $region2: #{simple_linear_model.1} parent=1 // pred_check
      _
    $region3: #{simple_linear_model.1} parent=1 // pred_check_branch
      %10 = sbr.rel (0) target = $region5
    $region4: #{simple_linear_model.1} parent=1 // pred_region
      _
    $region5: #{simple_linear_model.1} parent=1 // pred_fallthru
      _
    // Predicated region
    $region6: #{simple_linear_model.1} parent=1 // pred_check
      _
    $region7: #{simple_linear_model.1} parent=1 // pred_check_branch
      %12 = sbr.rel (0) target = $region9
    $region8: #{simple_linear_model.1} parent=1 // pred_region
      _
    $region9: #{simple_linear_model.1} parent=1 // pred_fallthru
      _
    // Predicated region
    $region10: #{simple_linear_model.1} parent=1 // pred_check
      _
    $region11: #{simple_linear_model.1} parent=1 // pred_check_branch
      %14 = sbr.rel (0) target = $region13
    $region12: #{simple_linear_model.1} parent=1 // pred_region
      _
    $region13: #{simple_linear_model.1} parent=1 // pred_fallthru
      _
    %v15 = vld [vmem:[%s0] sm:$0xff]
    %v16 = vld [vmem:[%s1] sm:$0xff]
    %v17 = vld [vmem:[%s1 + $0x8] sm:$0xff]
    %v18 = vld [vmem:[%s1 + $0x10] sm:$0xff]
    %v19 = vld [vmem:[%s1 + $0x18] sm:$0xff]
    %v20 = vld [vmem:[%s1 + $0x20] sm:$0xff]
    %v21 = vld [vmem:[%s1 + $0x28] sm:$0xff]
    %v22 = vld [vmem:[%s1 + $0x30] sm:$0xff]
    %v23 = vld [vmem:[%s1 + $0x38] sm:$0xff]
    %v24 = vld [vmem:[%s1 + $0x40] sm:$0xff]
    %v25 = vld [vmem:[%s1 + $0x48] sm:$0xff]
    %v26 = vld [vmem:[%s1 + $0x50] sm:$0xff]
    %v27 = vld [vmem:[%s1 + $0x58] sm:$0xff]
    %v28 = vld [vmem:[%s1 + $0x60] sm:$0xff]
    %v29 = vld [vmem:[%s1 + $0x68] sm:$0xff]
    %v30 = vld [vmem:[%s1 + $0x70] sm:$0xff]
    %v31 = vld [vmem:[%s1 + $0x78] sm:$0xff]
    %v32 = vld [vmem:[%s2] sm:$0x1]
    %v34 = vlaneseq
    %v35 = vshrl.u32 %v34, 7
    %v36 = vsub.s32 0, %v35
    %v37 = vrot.slane %v32, %v36
    %39 = vmatprep.subr.mxu0 0.0
    %40 = vmatpush1.msra.mxu0 %v16
    %41 = vmatprep.subr.mxu0 0.0
    %42 = vmatpush1.msra.mxu0 %v17
    %43 = vmatprep.subr.mxu0 0.0
    %44 = vmatpush1.msra.mxu0 %v18
    %45 = vmatprep.subr.mxu0 0.0
    %46 = vmatpush1.msra.mxu0 %v19
    %47 = vmatprep.subr.mxu0 0.0
    %48 = vmatpush1.msra.mxu0 %v20
    %49 = vmatprep.subr.mxu0 0.0
    %50 = vmatpush1.msra.mxu0 %v21
    %51 = vmatprep.subr.mxu0 0.0
    %52 = vmatpush1.msra.mxu0 %v22
    %53 = vmatprep.subr.mxu0 0.0
    %54 = vmatpush1.msra.mxu0 %v23
    %55 = vmatprep.subr.mxu0 0.0
    %56 = vmatpush1.msra.mxu0 %v24
    %57 = vmatprep.subr.mxu0 0.0
    %58 = vmatpush1.msra.mxu0 %v25
    %59 = vmatprep.subr.mxu0 0.0
    %60 = vmatpush1.msra.mxu0 %v26
    %61 = vmatprep.subr.mxu0 0.0
    %62 = vmatpush1.msra.mxu0 %v27
    %63 = vmatprep.subr.mxu0 0.0
    %64 = vmatpush1.msra.mxu0 %v28
    %65 = vmatprep.subr.mxu0 0.0
    %66 = vmatpush1.msra.mxu0 %v29
    %67 = vmatprep.subr.mxu0 0.0
    %68 = vmatpush1.msra.mxu0 %v30
    %69 = vmatprep.subr.mxu0 0.0
    %70 = vmatpush1.msra.mxu0 %v31
    %71 = vmatprep.subr.mxu0 0.0
    %72 = vmatpush1.msra.mxu0 0.0
    %73 = vmatprep.subr.mxu0 0.0
    %74 = vmatpush1.msra.mxu0 0.0
    %75 = vmatprep.subr.mxu0 0.0
    %76 = vmatpush1.msra.mxu0 0.0
    %77 = vmatprep.subr.mxu0 0.0
    %78 = vmatpush1.msra.mxu0 0.0
    %79 = vmatprep.subr.mxu0 0.0
    %80 = vmatpush1.msra.mxu0 0.0
    %81 = vmatprep.subr.mxu0 0.0
    %82 = vmatpush1.msra.mxu0 0.0
    %83 = vmatprep.subr.mxu0 0.0
    %84 = vmatpush1.msra.mxu0 0.0
    %85 = vmatprep.subr.mxu0 0.0
    %86 = vmatpush1.msra.mxu0 0.0
    %87 = vmatprep.subr.mxu0 0.0
    %88 = vmatpush1.msra.mxu0 0.0
    %89 = vmatprep.subr.mxu0 0.0
    %90 = vmatpush1.msra.mxu0 0.0
    %91 = vmatprep.subr.mxu0 0.0
    %92 = vmatpush1.msra.mxu0 0.0
    %93 = vmatprep.subr.mxu0 0.0
    %94 = vmatpush1.msra.mxu0 0.0
    %95 = vmatprep.subr.mxu0 0.0
    %96 = vmatpush1.msra.mxu0 0.0
    %97 = vmatprep.subr.mxu0 0.0
    %98 = vmatpush1.msra.mxu0 0.0
    %99 = vmatprep.subr.mxu0 0.0
    %100 = vmatpush1.msra.mxu0 0.0
    %101 = vmatprep.subr.mxu0 0.0
    %102 = vmatpush1.msra.mxu0 0.0
    %103 = vmatprep.mubr.f32.mxu0 0.0
    %104 = vmatmul.mubr.f32.gmra.mrb[0].mxu0 %v15
    %v105 = vpop.f32.mrb[0].mxu0
    %v106 = vadd.f32 %v37, %v105
    %v107 = vpop.f32.mrb[0].mxu0
    %108 = vdwg.mxu0
    %109 = vst [vmem:[#allocation2] sm:$0xff] %v106
    // Predicated region
    $region14: #{simple_linear_model.1} parent=1 // pred_check
      _
    $region15: #{simple_linear_model.1} parent=1 // pred_check_branch
      %111 = sbr.rel (0) target = $region17
    $region16: #{simple_linear_model.1} parent=1 // pred_region
      %s113 = ssub.s32 128, 128
      %114 = vsyncadd [#allocation3], %s113
      %s116 = sshll.u32 [#allocation2], 4
      %s117 = int_to_ptr.vmem [resolvable:$true] %s116
      %119 = dma.vmem_to_hbm [thread:$0]  %s117, 128, %s3, [#allocation3]
    $region17: #{simple_linear_model.1} parent=1 // pred_fallthru
      _
    // Predicated region
    $region18: #{simple_linear_model.1} parent=1 // pred_check
      _
    $region19: #{simple_linear_model.1} parent=1 // pred_check_branch
      %121 = sbr.rel (0) target = $region21
    $region20: #{simple_linear_model.1} parent=1 // pred_region
      %122 = dma.done [#allocation3], 128
    $region21: #{simple_linear_model.1} parent=1 // pred_fallthru
      _
    %123 = vsyncpa [#allocation3], 1

</llo_original>
